<compile_context>
chip_gen: v7x
topology: tpu7x:2x2x1
jax: 0.10.0
libtpu: 0.0.40
codegen_flags: <defaults>
</compile_context>

<pallas_src>
import functools

import jax
import jax.numpy as jnp
from jax.experimental import pallas as pl
from jax.experimental.pallas import tpu as pltpu


# ---------------------------------------------------------------------------
# Kernels
# ---------------------------------------------------------------------------

def _sca_kernel(x_ref, wt_ref, b_ref, o_ref, *, low_precision_mul):
    """Single pass: pooled sum + 1x1 conv + broadcast scale on one (B, C, HW) block."""
    x = x_ref[...]                                                    # (B, C, HW)
    pooled = jnp.sum(x.astype(jnp.float32), axis=-1)                  # (B, C) global sum
    y = jnp.dot(pooled, wt_ref[...],
                preferred_element_type=jnp.float32) + b_ref[...]      # (B, C) gates
    if low_precision_mul:
        # bf16-native VPU (v6e/v7x): no full-block f32 temporary, half the VALU work.
        o_ref[...] = (x * y.astype(x.dtype)[:, :, None]).astype(o_ref.dtype)
    else:
        o_ref[...] = (x.astype(jnp.float32) * y[:, :, None]).astype(o_ref.dtype)


def _pool_gate_kernel(x_ref, wt_ref, b_ref, y_ref, acc_ref, *, hw, thw):
    """Two-pass, pass A: tiled-HW pooled sum; gate (matmul + bias) emitted at last tile."""
    j = pl.program_id(1)

    @pl.when(j == 0)
    def _():
        acc_ref[...] = jnp.zeros_like(acc_ref)

    x = x_ref[...].astype(jnp.float32)                                # (1, C, thw)
    if hw % thw != 0:
        # Ragged last HW tile: zero out-of-bounds lanes so the pooled sum stays exact.
        lane = jax.lax.broadcasted_iota(jnp.int32, x.shape, 2) + j * thw
        x = jnp.where(lane < hw, x, 0.0)
    acc_ref[...] += jnp.sum(x, axis=-1)                               # (1, C)

    @pl.when(j == pl.num_programs(1) - 1)
    def _():
        g = jnp.dot(acc_ref[...], wt_ref[...],
                    preferred_element_type=jnp.float32) + b_ref[...]  # (1, C)
        y_ref[...] = g.reshape(y_ref.shape)                           # (1, 1, C)


def _scale_kernel(x_ref, y_ref, o_ref, *, low_precision_mul):
    """Two-pass, pass B: broadcast multiply of one (1, C, thw) tile by its channel gates."""
    x = x_ref[...]                                                    # (1, C, thw)
    g = y_ref[...][0, 0, :]                                           # (C,) f32 gates
    if low_precision_mul:
        o_ref[...] = (x * g.astype(x.dtype)[None, :, None]).astype(o_ref.dtype)
    else:
        o_ref[...] = (x.astype(jnp.float32) * g[None, :, None]).astype(o_ref.dtype)


# ---------------------------------------------------------------------------
# Host-side (trace-time, all static) helpers
# ---------------------------------------------------------------------------

def _vmem_budget_bytes():
    try:
        cap = int(pltpu.get_tpu_info().vmem_capacity_bytes)
    except Exception:
        cap = 64 << 20            # conservative: v7x has the smallest per-TC VMEM
    return max(cap - (16 << 20), 32 << 20)


def _use_low_precision_mul(dtype):
    if jnp.dtype(dtype).itemsize >= 4:
        return False
    try:
        kind = jax.devices()[0].device_kind.lower()
    except Exception:
        kind = ""
    # v5e (and older) VPUs have no bf16 ALUs -> the upconvert happens anyway; keep f32 math.
    return not any(g in kind for g in ("v2", "v3", "v4", "v5"))


def _single_pass_vmem(b, c, hw, elem):
    block = b * c * hw * elem
    f32_tmp = b * c * hw * 4 if elem < 4 else 0       # in-kernel f32 temporaries
    params = 2 * (c * c * 4 + c * 4)
    return 4 * block + f32_tmp + params + (1 << 20)


def _sca_two_pass(x, wt, b, low_mul, vmem_budget, hw_tile):
    """Fallback when a single-image (C, HW) slab exceeds the VMEM budget: tile the HW axis."""
    # TODO(synk): pathological channel counts where even a (1, C, 128) column exceeds VMEM
    # would also need tiling over C (not implemented).
    N, C, HW = x.shape
    elem = x.dtype.itemsize

    if hw_tile is not None:
        thw = int(hw_tile)
    else:
        thw = max(128, ((2 << 20) // max(C * elem, 1)) // 128 * 128)  # ~2 MiB input tile
    if thw >= HW:
        thw = HW                                                      # full extent, exempt
    hw_blocks = pl.cdiv(HW, thw)

    tile = C * thw * elem
    f32_tmp = C * thw * 4 if elem < 4 else 0
    params = 2 * (C * C * 4 + C * 4)

    gates = pl.pallas_call(
        functools.partial(_pool_gate_kernel, hw=HW, thw=thw),
        out_shape=jax.ShapeDtypeStruct((N, 1, C), jnp.float32),
        grid=(N, hw_blocks),
        in_specs=[
            pl.BlockSpec((1, C, thw), lambda i, j: (i, 0, j)),
            pl.BlockSpec((C, C), lambda i, j: (0, 0)),
            pl.BlockSpec((1, C), lambda i, j: (0, 0)),
        ],
        out_specs=pl.BlockSpec((1, 1, C), lambda i, j: (i, 0, 0)),
        scratch_shapes=[pltpu.VMEM((1, C), jnp.float32)],
        compiler_params=pltpu.CompilerParams(
            dimension_semantics=("parallel", "arbitrary"),
            vmem_limit_bytes=int(min(vmem_budget,
                                     2 * tile + f32_tmp + params + (2 << 20))),
        ),
        cost_estimate=pl.CostEstimate(flops=2 * N * C * (HW + C), transcendentals=0,
                                      bytes_accessed=N * C * HW * elem + C * C * 4),
    )(x, wt, b)

    return pl.pallas_call(
        functools.partial(_scale_kernel, low_precision_mul=low_mul),
        out_shape=jax.ShapeDtypeStruct((N, C, HW), x.dtype),
        grid=(N, hw_blocks),
        in_specs=[
            pl.BlockSpec((1, C, thw), lambda i, j: (i, 0, j)),
            pl.BlockSpec((1, 1, C), lambda i, j: (i, 0, 0)),
        ],
        out_specs=pl.BlockSpec((1, C, thw), lambda i, j: (i, 0, j)),
        compiler_params=pltpu.CompilerParams(
            dimension_semantics=("parallel", "parallel"),
            vmem_limit_bytes=int(min(vmem_budget,
                                     4 * tile + f32_tmp + N * C * 4 + (2 << 20))),
        ),
        cost_estimate=pl.CostEstimate(flops=N * C * HW, transcendentals=0,
                                      bytes_accessed=2 * N * C * HW * elem + N * C * 4),
    )(x, gates)


# ---------------------------------------------------------------------------
# Public entry point
# ---------------------------------------------------------------------------

@functools.partial(jax.jit, static_argnames=("force_two_pass", "hw_tile"))
def sca_forward(x_nchw, weight, bias, *, force_two_pass=False, hw_tile=None):
    """x_nchw: (N, C, H, W); weight: (C, C, 1, 1); bias: (C,)."""
    N, C, H, W = x_nchw.shape
    HW = H * W
    elem = x_nchw.dtype.itemsize

    x = x_nchw.reshape(N, C, HW)     # bitcast view: no pad, no copy, no output slice

    # Fold the 1/(H*W) mean factor into the weight; pre-transpose so the kernel dot has
    # natural contraction dims (no in-kernel XLU transpose).
    wt = (weight.reshape(C, C).astype(jnp.float32) / float(HW)).T     # (C_in, C_out)
    b = bias.reshape(1, C).astype(jnp.float32)

    low_mul = _use_low_precision_mul(x.dtype)
    vmem_budget = _vmem_budget_bytes()

    # Batch images per grid step (amortize ~0.35 us/step, stay on the HBM-roofline
    # plateau), capped so the "parallel" grid axis has >= 2 steps (both v7x TensorCores
    # get work) and so the block set fits the VMEM budget.
    per_image = C * HW * elem
    B = max(1, min(N, (4 << 20) // max(per_image, 1)))
    if N >= 2:
        B = min(B, max(1, N // 2))
    while B > 1 and _single_pass_vmem(B, C, HW, elem) > vmem_budget:
        B = max(1, B // 2)

    bytes_accessed = 2 * N * C * HW * elem + C * C * 4 + C * 4
    flops = 2 * N * C * (HW + C)

    if (not force_two_pass) and _single_pass_vmem(B, C, HW, elem) <= vmem_budget:
        out = pl.pallas_call(
            functools.partial(_sca_kernel, low_precision_mul=low_mul),
            out_shape=jax.ShapeDtypeStruct((N, C, HW), x.dtype),
            grid=(pl.cdiv(N, B),),      # ragged last batch block is clipped by Pallas
            in_specs=[
                pl.BlockSpec((B, C, HW), lambda n: (n, 0, 0)),
                pl.BlockSpec((C, C), lambda n: (0, 0)),
                pl.BlockSpec((1, C), lambda n: (0, 0)),
            ],
            out_specs=pl.BlockSpec((B, C, HW), lambda n: (n, 0, 0)),
            compiler_params=pltpu.CompilerParams(
                dimension_semantics=("parallel",),
                vmem_limit_bytes=int(max(_single_pass_vmem(B, C, HW, elem), 4 << 20)),
            ),
            cost_estimate=pl.CostEstimate(flops=flops, transcendentals=0,
                                          bytes_accessed=bytes_accessed),
        )(x, wt, b)
    else:
        out = _sca_two_pass(x, wt, b, low_mul, vmem_budget, hw_tile)

    return out.reshape(N, C, H, W)


def sca_reference(x_nchw, weight, bias):
    """Pure-JAX reference mirroring the PyTorch module."""
    N, C, H, W = x_nchw.shape
    pooled = jnp.mean(x_nchw.astype(jnp.float32), axis=(2, 3))        # (N, C)
    w = weight.reshape(C, C).astype(jnp.float32)
    y = pooled @ w.T + bias[None, :].astype(jnp.float32)              # (N, C)
    return (x_nchw.astype(jnp.float32) * y[:, :, None, None]).astype(x_nchw.dtype)


if __name__ == "__main__":
    key = jax.random.PRNGKey(0)

    # Test 1: canonical small shapes (HW a multiple of 128), single-pass path.
    kx, kw, kb = jax.random.split(key, 3)
    N, C, H, W = 2, 4, 16, 16
    x = jax.random.normal(kx, (N, C, H, W), dtype=jnp.float32)
    weight = jax.random.normal(kw, (C, C, 1, 1), dtype=jnp.float32) * 0.1
    bias = jax.random.normal(kb, (C,), dtype=jnp.float32) * 0.1
    out = jax.block_until_ready(sca_forward(x, weight, bias))
    assert out.shape == (N, C, H, W)
    assert jnp.allclose(out, sca_reference(x, weight, bias), atol=1e-5, rtol=1e-5)

    # Test 2: HW not a multiple of 128 (no-pad path) + ragged batch grid (N=5, B=2).
    kx2, kw2, kb2 = jax.random.split(jax.random.PRNGKey(1), 3)
    N2, C2, H2, W2 = 5, 8, 13, 13
    x2 = jax.random.normal(kx2, (N2, C2, H2, W2), dtype=jnp.float32)
    weight2 = jax.random.normal(kw2, (C2, C2, 1, 1), dtype=jnp.float32) * 0.1
    bias2 = jax.random.normal(kb2, (C2,), dtype=jnp.float32) * 0.1
    out2 = jax.block_until_ready(sca_forward(x2, weight2, bias2))
    assert out2.shape == (N2, C2, H2, W2)
    assert jnp.allclose(out2, sca_reference(x2, weight2, bias2), atol=1e-5, rtol=1e-5)

    # Test 3: force the two-pass (tiled-HW) fallback, including a ragged HW tile.
    out3 = jax.block_until_ready(
        sca_forward(x2, weight2, bias2, force_two_pass=True, hw_tile=128))
    assert out3.shape == (N2, C2, H2, W2)
    assert jnp.allclose(out3, sca_reference(x2, weight2, bias2), atol=1e-5, rtol=1e-5)

    print("KERNEL_OK")
</pallas_src>

<mosaic_0001>
module attributes {stable_mosaic.version = 11 : i64} {
  func.func @_sca_kernel(%arg0: i32, %arg1: memref<1x4x256xf32, #tpu.memory_space<vmem>>, %arg2: memref<4x4xf32, #tpu.memory_space<vmem>>, %arg3: memref<1x4xf32, #tpu.memory_space<vmem>>, %arg4: memref<1x4x256xf32, #tpu.memory_space<vmem>>) attributes {dimension_semantics = [#tpu.dimension_semantics<parallel>], iteration_bounds = array<i64: 2>, scalar_prefetch = 0 : i64, scratch_operands = 0 : i64, tpu.core_type = #tpu.core_type<tc>, window_params = [{transform_indices = @transform_0, window_bounds = array<i64: 1, 4, 256>}, {pipeline_mode = #tpu.pipeline_mode<synchronous>, transform_indices = @transform_1, window_bounds = array<i64: 4, 4>}, {pipeline_mode = #tpu.pipeline_mode<synchronous>, transform_indices = @transform_2, window_bounds = array<i64: 1, 4>}, {transform_indices = @transform_3, window_bounds = array<i64: 1, 4, 256>}]} {
    %c0 = arith.constant 0 : index
    %c0_0 = arith.constant 0 : index
    %c0_1 = arith.constant 0 : index
    %0 = vector.load %arg1[%c0, %c0_0, %c0_1] : memref<1x4x256xf32, #tpu.memory_space<vmem>>, vector<1x4x256xf32>
    %cst = arith.constant dense<0.000000e+00> : vector<1x4xf32>
    %1 = vector.multi_reduction <add>, %0, %cst [2] : vector<1x4x256xf32> to vector<1x4xf32>
    %c0_2 = arith.constant 0 : index
    %c0_3 = arith.constant 0 : index
    %2 = vector.load %arg2[%c0_2, %c0_3] : memref<4x4xf32, #tpu.memory_space<vmem>>, vector<4x4xf32>
    %cst_4 = arith.constant dense<0.000000e+00> : vector<1x4xf32>
    %3 = tpu.matmul %1, %2, %cst_4 {dimension_numbers = #tpu.dot_dimension_numbers<[1], [0], [0], [1], [0, 0, 1, 1], [], []>} : vector<1x4xf32>, vector<4x4xf32>, vector<1x4xf32> -> vector<1x4xf32>
    %c0_5 = arith.constant 0 : index
    %c0_6 = arith.constant 0 : index
    %4 = vector.load %arg3[%c0_5, %c0_6] : memref<1x4xf32, #tpu.memory_space<vmem>>, vector<1x4xf32>
    %5 = arith.addf %3, %4 : vector<1x4xf32>
    %6 = vector.shape_cast %5 : vector<1x4xf32> to vector<1x4x1xf32>
    %7 = vector.broadcast %6 : vector<1x4x1xf32> to vector<1x4x256xf32>
    %8 = arith.mulf %0, %7 : vector<1x4x256xf32>
    %c0_7 = arith.constant 0 : index
    %c0_8 = arith.constant 0 : index
    %c0_9 = arith.constant 0 : index
    %9 = vector.load %arg4[%c0_7, %c0_8, %c0_9] : memref<1x4x256xf32, #tpu.memory_space<vmem>>, vector<1x4x256xf32>
    tpu.vector_store %arg4[%c0_7, %c0_8, %c0_9], %8 {strides = array<i32>} : memref<1x4x256xf32, #tpu.memory_space<vmem>>, vector<1x4x256xf32>,
    return
  }
  func.func @transform_0(%arg0: i32) -> (i32, i32, i32) {
    %c0_i32 = arith.constant 0 : i32
    %c0_i32_0 = arith.constant 0 : i32
    %c0_i32_1 = arith.constant 0 : i32
    return %arg0, %c0_i32, %c0_i32_0 : i32, i32, i32
  }
  func.func @transform_1(%arg0: i32) -> (i32, i32) {
    %c0_i32 = arith.constant 0 : i32
    %c0_i32_0 = arith.constant 0 : i32
    %c0_i32_1 = arith.constant 0 : i32
    return %c0_i32, %c0_i32_0 : i32, i32
  }
  func.func @transform_2(%arg0: i32) -> (i32, i32) {
    %c0_i32 = arith.constant 0 : i32
    %c0_i32_0 = arith.constant 0 : i32
    %c0_i32_1 = arith.constant 0 : i32
    return %c0_i32, %c0_i32_0 : i32, i32
  }
  func.func @transform_3(%arg0: i32) -> (i32, i32, i32) {
    %c0_i32 = arith.constant 0 : i32
    %c0_i32_0 = arith.constant 0 : i32
    %c0_i32_1 = arith.constant 0 : i32
    return %arg0, %c0_i32, %c0_i32_0 : i32, i32, i32
  }
}

</mosaic_0001>

<llo_original>
// kernel: sca_forward.1
$region0: #{sca_forward.1}
  #allocation0 [shape = 'u32[]', space=smem, size = 0x4, offset = 0x4, fixed_abs, tag = 'smem constant byte address 0x4 - core index']
  #allocation1 [shape = 'u32[144,128]{1,0:T(1,128)}', space=vmem, size = 0x12000, scoped, tag = 'internal scratch']
  %s0 = inlined_call_operand.vmem [shape: f32[2,4,256], index: 0, kind: input, shape index: {}]
  %s1 = inlined_call_operand.vmem [shape: f32[4,4], index: 1, kind: input, shape index: {}]
  %s2 = inlined_call_operand.vmem [shape: f32[1,4], index: 2, kind: input, shape index: {}]
  %s3 = inlined_call_operand.vmem [shape: f32[2,4,256], index: 3, kind: output, shape index: {}]
  %s4 = sld [smem:[#allocation0]]
  $region45: #{sca_forward.1} parent=0
    _
  %s6 = ssub.s32 1, %s4
  %s7 = scalar_select 0, %s6, %s4
  loop: start=0, step=1, limit=4
  $region2: #{sca_forward.1} parent=0 // loop_pre_header
    _
  $region3: #{sca_forward.1} parent=0 // loop_header
    %s9 = sphi 0, %s13
    %p10 = scmp.ge.s32.totalorder %s9, 4
    %s19 = sphi 0, %s21
    %s22 = sphi 0, %s19
    %s23 = sphi 0, %s22
    %s39 = sphi 0, %s23
    %s43 = sphi 0, %s43
    %s45 = sphi 0, %s43
    %s46 = sphi 0, %s45
    %s60 = sphi 0, %s46
    %s64 = sphi 0, %s64
    %s66 = sphi 0, %s64
    %s67 = sphi 0, %s66
    %s81 = sphi 0, %s67
    %s87 = sphi 0, %s89
    %s90 = sphi 0, %s87
    %s91 = sphi 0, %s90
    %s107 = sphi 0, %s91
  $region4: #{sca_forward.1} parent=0 // loop_header_branch
    %12 = sbr.rel (%p10) target = $region8
  $region5: #{sca_forward.1} parent=0 // loop_body
    %s14 = ssub.s32 %s9, 1
    %s15 = ssub.s32 %s9, 2
    %s16 = sadd.s32 %s9, 1
    %s17 = ssub.s32 %s9, %s16
    %p18 = scmp.eq.s32.totalorder %s17, 0
    %s20 = sadd.s32 %s19, 1
    %s21 = scalar_select %p18, %s19, %s20
    %p24 = pneg %p18
    %p25 = scmp.eq.s32.totalorder %s9, 1
    %p26 = por %p24, %p25
    %p27 = scmp.ne.s32.totalorder %s19, %s22
    %p28 = scmp.eq.s32.totalorder %s9, 0
    %p29 = por %p27, %p28
    %p30 = scmp.ne.s32.totalorder %s19, %s22
    %p31 = scmp.eq.s32.totalorder %s14, 1
    %p32 = por %p30, %p31
    %p33 = scmp.ne.s32.totalorder %s22, %s23
    %p34 = scmp.eq.s32.totalorder %s14, 0
    %p35 = por %p33, %p34
    %p36 = scmp.ne.s32.totalorder %s22, %s23
    %p37 = scmp.eq.s32.totalorder %s15, 1
    %p38 = por %p36, %p37
    %p40 = scmp.ne.s32.totalorder %s23, %s39
    %p41 = scmp.eq.s32.totalorder %s15, 0
    %p42 = por %p40, %p41
    %s44 = sadd.s32 %s43, 1
    %p47 = scmp.eq.s32.totalorder %s9, 1
    %p48 = scmp.ne.s32.totalorder %s43, %s45
    %p49 = scmp.eq.s32.totalorder %s9, 0
    %p50 = por %p48, %p49
    %p51 = scmp.ne.s32.totalorder %s43, %s45
    %p52 = scmp.eq.s32.totalorder %s14, 1
    %p53 = por %p51, %p52
    %p54 = scmp.ne.s32.totalorder %s45, %s46
    %p55 = scmp.eq.s32.totalorder %s14, 0
    %p56 = por %p54, %p55
    %p57 = scmp.ne.s32.totalorder %s45, %s46
    %p58 = scmp.eq.s32.totalorder %s15, 1
    %p59 = por %p57, %p58
    %p61 = scmp.ne.s32.totalorder %s46, %s60
    %p62 = scmp.eq.s32.totalorder %s15, 0
    %p63 = por %p61, %p62
    %s65 = sadd.s32 %s64, 1
    %p68 = scmp.eq.s32.totalorder %s9, 1
    %p69 = scmp.ne.s32.totalorder %s64, %s66
    %p70 = scmp.eq.s32.totalorder %s9, 0
    %p71 = por %p69, %p70
    %p72 = scmp.ne.s32.totalorder %s64, %s66
    %p73 = scmp.eq.s32.totalorder %s14, 1
    %p74 = por %p72, %p73
    %p75 = scmp.ne.s32.totalorder %s66, %s67
    %p76 = scmp.eq.s32.totalorder %s14, 0
    %p77 = por %p75, %p76
    %p78 = scmp.ne.s32.totalorder %s66, %s67
    %p79 = scmp.eq.s32.totalorder %s15, 1
    %p80 = por %p78, %p79
    %p82 = scmp.ne.s32.totalorder %s67, %s81
    %p83 = scmp.eq.s32.totalorder %s15, 0
    %p84 = por %p82, %p83
    %s85 = ssub.s32 %s9, %s16
    %p86 = scmp.eq.s32.totalorder %s85, 0
    %s88 = sadd.s32 %s87, 1
    %s89 = scalar_select %p86, %s87, %s88
    %p92 = pneg %p86
    %p93 = scmp.eq.s32.totalorder %s9, 1
    %p94 = por %p92, %p93
    %p95 = scmp.ne.s32.totalorder %s87, %s90
    %p96 = scmp.eq.s32.totalorder %s9, 0
    %p97 = por %p95, %p96
    %p98 = scmp.ne.s32.totalorder %s87, %s90
    %p99 = scmp.eq.s32.totalorder %s14, 1
    %p100 = por %p98, %p99
    %p101 = scmp.ne.s32.totalorder %s90, %s91
    %p102 = scmp.eq.s32.totalorder %s14, 0
    %p103 = por %p101, %p102
    %p104 = scmp.ne.s32.totalorder %s90, %s91
    %p105 = scmp.eq.s32.totalorder %s15, 1
    %p106 = por %p104, %p105
    %p108 = scmp.ne.s32.totalorder %s91, %s107
    %p109 = scmp.eq.s32.totalorder %s15, 0
    %p110 = por %p108, %p109
    %p111 = scmp.le.s32.totalorder 1, %s9
    %p112 = scmp.lt.s32.totalorder %s9, 3
    %p113 = pnand %p111, %p112
    %p114 = pneg %p113
    // Predicated region
    $region9: #{sca_forward.1} parent=5 // pred_check
      _
    $region10: #{sca_forward.1} parent=5 // pred_check_branch
      %116 = sbr.rel (%p113) target = $region12
    $region11: #{sca_forward.1} parent=5 // pred_region
      %s117 = ssub.s32 %s9, 1
      // Predicated region
      $region13: #{sca_forward.1} parent=11 // pred_check
        %p118 = pneg %p56
      $region14: #{sca_forward.1} parent=11 // pred_check_branch
        %120 = sbr.rel (%p118) target = $region16
      $region15: #{sca_forward.1} parent=11 // pred_region
        _
      $region16: #{sca_forward.1} parent=11 // pred_fallthru
        _
      // Predicated region
      $region17: #{sca_forward.1} parent=11 // pred_check
        %p121 = pneg %p77
      $region18: #{sca_forward.1} parent=11 // pred_check_branch
        %123 = sbr.rel (%p121) target = $region20
      $region19: #{sca_forward.1} parent=11 // pred_region
        _
      $region20: #{sca_forward.1} parent=11 // pred_fallthru
        _
    $region12: #{sca_forward.1} parent=5 // pred_fallthru
      _
    %p124 = scmp.lt.s32.totalorder %s9, 2
    // Predicated region
    $region21: #{sca_forward.1} parent=5 // pred_check
      %p125 = pneg %p124
    $region22: #{sca_forward.1} parent=5 // pred_check_branch
      %127 = sbr.rel (%p125) target = $region24
    $region23: #{sca_forward.1} parent=5 // pred_region
      // Predicated region
      $region25: #{sca_forward.1} parent=23 // pred_check
        %p128 = pneg %p29
      $region26: #{sca_forward.1} parent=23 // pred_check_branch
        %130 = sbr.rel (%p128) target = $region28
      $region27: #{sca_forward.1} parent=23 // pred_region
        %p131 = scmp.lt.s32.totalorder %s9, 1
        %s132 = scalar_select %p131, %s9, 1
        %s133 = smul.addr %s132, 2
        %s134 = smul.addr %s133, 4
        %s135 = scalar_lea.vmem %s0, %s134
      $region28: #{sca_forward.1} parent=23 // pred_fallthru
        _
    $region24: #{sca_forward.1} parent=5 // pred_fallthru
      _
    %p136 = scmp.le.s32.totalorder 1, %s9
    %p137 = scmp.lt.s32.totalorder %s9, 3
    %p138 = pnand %p136, %p137
    %p139 = pneg %p138
    // Predicated region
    $region29: #{sca_forward.1} parent=5 // pred_check
      _
    $region30: #{sca_forward.1} parent=5 // pred_check_branch
      %141 = sbr.rel (%p138) target = $region32
    $region31: #{sca_forward.1} parent=5 // pred_region
      %s142 = ssub.s32 %s9, 1
      %p143 = scmp.lt.s32.totalorder %s14, 1
      %s144 = scalar_select %p143, %s14, 1
      %s145 = smul.addr %s144, 2
      %s146 = smul.addr %s145, 4
      %s147 = scalar_lea.vmem %s0, %s146
      %p148 = pneg %p35
      %p149 = pneg %p32
      %p150 = pneg %p56
      %p151 = pneg %p53
      %p152 = pneg %p77
      %p153 = pneg %p74
      %p154 = pneg %p103
      %p155 = pneg %p100
      %p156 = scmp.lt.s32.totalorder %s14, 1
      %s157 = scalar_select %p156, %s14, 1
      %s158 = smul.addr %s157, 2
      %s159 = smul.addr %s158, 4
      %s160 = scalar_lea.vmem %s3, %s159
      %p161 = scmp.lt.s32.totalorder %s14, 1
      %s162 = scalar_select %p161, %s14, 1
      %s163 = smul.addr %s162, 2
      %s164 = smul.addr %s163, 4
      %s165 = scalar_lea.vmem %s0, %s164
      %p166 = scmp.lt.s32.totalorder %s14, 1
      %s167 = scalar_select %p166, %s14, 1
      %s168 = smul.addr %s167, 2
      %s169 = smul.addr %s168, 4
      %s170 = scalar_lea.vmem %s3, %s169
      %v171 = vld [vmem:[%s165] sm:$0xff]
      %v173 = vcombine.high %v171, %v171
      %vm175 = vcmask 1043456
      %v176 = vsel %vm175, %v171, 0.0
      %v177 = vsel %vm175, %v173, 0.0
      %v178 = vadd.f32 %v176, %v177
      %179 = vadd.xlane.f32.xlu0 %v178
      %v180 = vpop.xlane.xlu0 %179
      %v181 = vld [vmem:[%s1] sm:$0xf]
      %v182 = vld [vmem:[%s2] sm:$0x1]
      %v184 = vlaneseq
      %v185 = vand.u32 %v184, 127
      %v186 = vlaneseq
      %v187 = vshrl.u32 %v186, 7
      %v188 = vsub.s32 %v185, %v187
      %v189 = vrot.slane %v180, %v188
      %vm190 = vcmask 31744
      %v191 = vsel %vm190, %v189, 0
      %v194 = vsel %vm175, %v181, 0
      %196 = vmatprep.subr.mxu0 0.0
      %197 = vmatpush1.msra.mxu0 %v194
      %198 = vmatprep.subr.mxu0 0.0
      %199 = vmatpush1.msra.mxu0 0.0
      %200 = vmatprep.subr.mxu0 0.0
      %201 = vmatpush1.msra.mxu0 0.0
      %202 = vmatprep.subr.mxu0 0.0
      %203 = vmatpush1.msra.mxu0 0.0
      %204 = vmatprep.subr.mxu0 0.0
      %205 = vmatpush1.msra.mxu0 0.0
      %206 = vmatprep.subr.mxu0 0.0
      %207 = vmatpush1.msra.mxu0 0.0
      %208 = vmatprep.subr.mxu0 0.0
      %209 = vmatpush1.msra.mxu0 0.0
      %210 = vmatprep.subr.mxu0 0.0
      %211 = vmatpush1.msra.mxu0 0.0
      %212 = vmatprep.subr.mxu0 0.0
      %213 = vmatpush1.msra.mxu0 0.0
      %214 = vmatprep.subr.mxu0 0.0
      %215 = vmatpush1.msra.mxu0 0.0
      %216 = vmatprep.subr.mxu0 0.0
      %217 = vmatpush1.msra.mxu0 0.0
      %218 = vmatprep.subr.mxu0 0.0
      %219 = vmatpush1.msra.mxu0 0.0
      %220 = vmatprep.subr.mxu0 0.0
      %221 = vmatpush1.msra.mxu0 0.0
      %222 = vmatprep.subr.mxu0 0.0
      %223 = vmatpush1.msra.mxu0 0.0
      %224 = vmatprep.subr.mxu0 0.0
      %225 = vmatpush1.msra.mxu0 0.0
      %226 = vmatprep.subr.mxu0 0.0
      %227 = vmatpush1.msra.mxu0 0.0
      %228 = vmatprep.subr.mxu0 0.0
      %229 = vmatpush1.msra.mxu0 0.0
      %230 = vmatprep.subr.mxu0 0.0
      %231 = vmatpush1.msra.mxu0 0.0
      %232 = vmatprep.subr.mxu0 0.0
      %233 = vmatpush1.msra.mxu0 0.0
      %234 = vmatprep.subr.mxu0 0.0
      %235 = vmatpush1.msra.mxu0 0.0
      %236 = vmatprep.subr.mxu0 0.0
      %237 = vmatpush1.msra.mxu0 0.0
      %238 = vmatprep.subr.mxu0 0.0
      %239 = vmatpush1.msra.mxu0 0.0
      %240 = vmatprep.subr.mxu0 0.0
      %241 = vmatpush1.msra.mxu0 0.0
      %242 = vmatprep.subr.mxu0 0.0
      %243 = vmatpush1.msra.mxu0 0.0
      %244 = vmatprep.subr.mxu0 0.0
      %245 = vmatpush1.msra.mxu0 0.0
      %246 = vmatprep.subr.mxu0 0.0
      %247 = vmatpush1.msra.mxu0 0.0
      %248 = vmatprep.subr.mxu0 0.0
      %249 = vmatpush1.msra.mxu0 0.0
      %250 = vmatprep.subr.mxu0 0.0
      %251 = vmatpush1.msra.mxu0 0.0
      %252 = vmatprep.subr.mxu0 0.0
      %253 = vmatpush1.msra.mxu0 0.0
      %254 = vmatprep.subr.mxu0 0.0
      %255 = vmatpush1.msra.mxu0 0.0
      %256 = vmatprep.subr.mxu0 0.0
      %257 = vmatpush1.msra.mxu0 0.0
      %258 = vmatprep.subr.mxu0 0.0
      %259 = vmatpush1.msra.mxu0 0.0
      %260 = vmatprep.mubr.f32.mxu0 0.0
      %261 = vmatmul.mubr.f32.gmra.mrb[0].mxu0 %v191
      %v262 = vpop.f32.mrb[0].mxu0
      %v263 = vadd.f32 %v182, %v262
      %v264 = vpop.f32.mrb[0].mxu0
      %265 = vdwg.mxu0
      %v266 = vlaneseq
      %v267 = vshrl.u32 %v266, 7
      %v268 = vsub.s32 0, %v267
      %v269 = vrot.slane %v263, %v268
      %271 = vbcast.lane.b32.xlu0 %v269, 256
      %v272 = vpop.permute.xlu0 %271
      %v275 = vunpack.c.l.s4 839922192
      %v276 = vunpack.c.0.s8 %v275
      %v277 = vlaneseq
      %v278 = vshrl.u32 %v277, 7
      %v279 = vsub.s32 %v276, %v278
      %v280 = vrot.slane %v272, %v279
      %v282 = vmul.f32 %v171, %v280
      %283 = vst [vmem:[%s170] sm:$0xff] %v282
      %p284 = scmp.lt.s32.totalorder %s14, 1
      %s285 = scalar_select %p284, %s14, 1
      %s286 = smul.addr %s285, 2
      %s287 = smul.addr %s286, 4
      %s288 = scalar_lea.vmem %s3, %s287
      // Predicated region
      $region33: #{sca_forward.1} parent=31 // pred_check
        %p289 = pneg %p100
      $region34: #{sca_forward.1} parent=31 // pred_check_branch
        %291 = sbr.rel (%p289) target = $region36
      $region35: #{sca_forward.1} parent=31 // pred_region
        _
      $region36: #{sca_forward.1} parent=31 // pred_fallthru
        _
    $region32: #{sca_forward.1} parent=5 // pred_fallthru
      _
    %p292 = scmp.le.s32.totalorder 2, %s9
    // Predicated region
    $region37: #{sca_forward.1} parent=5 // pred_check
      %p293 = pneg %p292
    $region38: #{sca_forward.1} parent=5 // pred_check_branch
      %295 = sbr.rel (%p293) target = $region40
    $region39: #{sca_forward.1} parent=5 // pred_region
      %s296 = ssub.s32 %s9, 2
      // Predicated region
      $region41: #{sca_forward.1} parent=39 // pred_check
        %p297 = pneg %p106
      $region42: #{sca_forward.1} parent=39 // pred_check_branch
        %299 = sbr.rel (%p297) target = $region44
      $region43: #{sca_forward.1} parent=39 // pred_region
        %p300 = scmp.lt.s32.totalorder %s15, 1
        %s301 = scalar_select %p300, %s15, 1
        %s302 = smul.addr %s301, 2
        %s303 = smul.addr %s302, 4
        %s304 = scalar_lea.vmem %s3, %s303
      $region44: #{sca_forward.1} parent=39 // pred_fallthru
        _
    $region40: #{sca_forward.1} parent=5 // pred_fallthru
      _
  $region6: #{sca_forward.1} parent=0 // loop_footer
    %s13 = sadd.s32 1, %s9
  $region7: #{sca_forward.1} parent=0 // loop_footer_branch
    %8 = sbr.rel target = $region3
  $region8: #{sca_forward.1} parent=0 // loop_exit
    _

</llo_original>
